<compile_context>
chip_gen: v6e
topology: v6e:2x2x1
jax: 0.10.0
libtpu: 0.0.40
codegen_flags: <defaults>
</compile_context>

<pallas_src>
import jax
import jax.numpy as jnp
from jax import lax
from jax.experimental import pallas as pl
from jax.experimental.pallas import tpu as pltpu

_C_X1X2 = 21.6816
_C_X1SQ = 21.9377
_C_X2SQ = 33.6321

_LANES = 128
_IN_LANES = 2 * _LANES        # one output row (128 results) consumes 256 interleaved inputs
_MAX_BLOCK_ROWS = 1024        # 1024x256 f32 in + 1024x128 f32 out ~= 1.5 MiB per buffer set
_TARGET_TILES = 8             # aim for >= 8 grid steps so both v7x TensorCores stream HBM


def _round_up(a, m):
    return ((a + m - 1) // m) * m


def quad_lyapunov_kernel(x_ref, o_ref):
    # x_ref: (block_rows, 256) interleaved [x1, x2, x1, x2, ...], lane-dense f32.
    # o_ref: (block_rows, 128) compact results in natural element order.
    x = x_ref[...]

    # Constant 0/1 deinterleave matrices: W1[2j, j] = 1 picks x1, W2[2j+1, j] = 1
    # picks x2.  Selection by exact 0/1 is (essentially) exact through the MXU's
    # f32 multi-pass path, so precision matches the pure-VPU reference.
    rows = lax.broadcasted_iota(jnp.int32, (_IN_LANES, _LANES), 0)
    cols = lax.broadcasted_iota(jnp.int32, (_IN_LANES, _LANES), 1)
    w1 = (rows == 2 * cols).astype(x.dtype)
    w2 = (rows == 2 * cols + 1).astype(x.dtype)

    # MXU is otherwise idle in this bandwidth-bound kernel; use it to
    # deinterleave + compact so the store is a full-width unmasked vst.
    x1 = jnp.dot(x, w1, preferred_element_type=jnp.float32)
    x2 = jnp.dot(x, w2, preferred_element_type=jnp.float32)

    res = _C_X1X2 * (x1 * x2) + _C_X1SQ * (x1 * x1) + _C_X2SQ * (x2 * x2)
    o_ref[...] = res.astype(o_ref.dtype)


def quadratic_lyapunov_forward(x):
    """Pallas equivalent of quadratic_lyapunov_nn.forward: (N, 2) -> (N, 1) float32."""
    n = x.shape[0]
    x = x.astype(jnp.float32)

    # Free view of the contiguous (N, 2) buffer — no per-feature column slices.
    flat = x.reshape(-1)                      # [x1_0, x2_0, x1_1, x2_1, ...]

    # Tile sizing: each output row of 128 lanes consumes 256 interleaved inputs.
    rows_needed = pl.cdiv(2 * n, _IN_LANES)
    block_rows = _round_up(pl.cdiv(rows_needed, _TARGET_TILES), 8)
    block_rows = max(8, min(block_rows, _MAX_BLOCK_ROWS))
    num_tiles = pl.cdiv(rows_needed, block_rows)
    rows_pad = num_tiles * block_rows

    pad = rows_pad * _IN_LANES - 2 * n
    if pad:
        flat = jnp.pad(flat, (0, pad))        # single pad; only copy on the input side
    x_in = flat.reshape(rows_pad, _IN_LANES)  # free metadata reshape (contiguous)

    out = pl.pallas_call(
        quad_lyapunov_kernel,
        out_shape=jax.ShapeDtypeStruct((rows_pad, _LANES), jnp.float32),
        grid=(num_tiles,),
        in_specs=[pl.BlockSpec((block_rows, _IN_LANES), lambda i: (i, 0))],
        out_specs=pl.BlockSpec((block_rows, _LANES), lambda i: (i, 0)),
        compiler_params=pltpu.CompilerParams(
            dimension_semantics=("parallel",),
        ),
    )(x_in)

    # Contiguous trim back to the PyTorch-facing (N, 1) layout; free when n is
    # tile-aligned, otherwise a small fuseable copy (no strided slicing).
    return out.reshape(-1)[:n, None]


def quadratic_lyapunov_reference(x):
    x1 = x[:, 0]
    x2 = x[:, 1]
    res = _C_X1X2 * (x1 * x2) + _C_X1SQ * x1**2 + _C_X2SQ * x2**2
    return res[:, None]


if __name__ == "__main__":
    key = jax.random.PRNGKey(0)
    n = 8
    x = jax.random.normal(key, (n, 2), dtype=jnp.float32)

    out = quadratic_lyapunov_forward(x)
    out = jax.block_until_ready(out)

    ref = quadratic_lyapunov_reference(x)
    assert out.shape == (n, 1), out.shape
    assert out.dtype == jnp.float32, out.dtype
    assert jnp.allclose(out, ref, atol=1e-4, rtol=1e-5), (out, ref)

    print("KERNEL_OK")
</pallas_src>

<mosaic_0001>
module attributes {stable_mosaic.version = 11 : i64} {
  func.func @quad_lyapunov_kernel(%arg0: i32, %arg1: memref<8x256xf32, #tpu.memory_space<vmem>>, %arg2: memref<8x128xf32, #tpu.memory_space<vmem>>) attributes {dimension_semantics = [#tpu.dimension_semantics<parallel>], iteration_bounds = array<i64: 1>, scalar_prefetch = 0 : i64, scratch_operands = 0 : i64, tpu.core_type = #tpu.core_type<tc>, window_params = [{transform_indices = @transform_0, window_bounds = array<i64: 8, 256>}, {transform_indices = @transform_1, window_bounds = array<i64: 8, 128>}]} {
    %c0 = arith.constant 0 : index
    %c0_0 = arith.constant 0 : index
    %0 = vector.load %arg1[%c0, %c0_0] : memref<8x256xf32, #tpu.memory_space<vmem>>, vector<8x256xf32>
    %1 = tpu.iota {dimensions = array<i32: 0>} : vector<256x128xi32>
    %2 = tpu.iota {dimensions = array<i32: 1>} : vector<256x128xi32>
    %c2_i32 = arith.constant 2 : i32
    %3 = vector.broadcast %c2_i32 : i32 to vector<256x128xi32>
    %4 = arith.muli %3, %2 : vector<256x128xi32>
    %5 = arith.cmpi eq, %1, %4 : vector<256x128xi32>
    %6 = arith.extui %5 : vector<256x128xi1> to vector<256x128xi32>
    %7 = arith.sitofp %6 : vector<256x128xi32> to vector<256x128xf32>
    %c2_i32_1 = arith.constant 2 : i32
    %8 = vector.broadcast %c2_i32_1 : i32 to vector<256x128xi32>
    %9 = arith.muli %8, %2 : vector<256x128xi32>
    %c1_i32 = arith.constant 1 : i32
    %10 = vector.broadcast %c1_i32 : i32 to vector<256x128xi32>
    %11 = arith.addi %9, %10 : vector<256x128xi32>
    %12 = arith.cmpi eq, %1, %11 : vector<256x128xi32>
    %13 = arith.extui %12 : vector<256x128xi1> to vector<256x128xi32>
    %14 = arith.sitofp %13 : vector<256x128xi32> to vector<256x128xf32>
    %cst = arith.constant dense<0.000000e+00> : vector<8x128xf32>
    %15 = tpu.matmul %0, %7, %cst {dimension_numbers = #tpu.dot_dimension_numbers<[1], [0], [0], [1], [0, 0, 1, 1], [], []>} : vector<8x256xf32>, vector<256x128xf32>, vector<8x128xf32> -> vector<8x128xf32>
    %cst_2 = arith.constant dense<0.000000e+00> : vector<8x128xf32>
    %16 = tpu.matmul %0, %14, %cst_2 {dimension_numbers = #tpu.dot_dimension_numbers<[1], [0], [0], [1], [0, 0, 1, 1], [], []>} : vector<8x256xf32>, vector<256x128xf32>, vector<8x128xf32> -> vector<8x128xf32>
    %17 = arith.mulf %15, %16 : vector<8x128xf32>
    %cst_3 = arith.constant 2.168160e+01 : f32
    %18 = vector.broadcast %cst_3 : f32 to vector<8x128xf32>
    %19 = arith.mulf %18, %17 : vector<8x128xf32>
    %20 = arith.mulf %15, %15 : vector<8x128xf32>
    %cst_4 = arith.constant 2.193770e+01 : f32
    %21 = vector.broadcast %cst_4 : f32 to vector<8x128xf32>
    %22 = arith.mulf %21, %20 : vector<8x128xf32>
    %23 = arith.addf %19, %22 : vector<8x128xf32>
    %24 = arith.mulf %16, %16 : vector<8x128xf32>
    %cst_5 = arith.constant 3.363210e+01 : f32
    %25 = vector.broadcast %cst_5 : f32 to vector<8x128xf32>
    %26 = arith.mulf %25, %24 : vector<8x128xf32>
    %27 = arith.addf %23, %26 : vector<8x128xf32>
    %c0_6 = arith.constant 0 : index
    %c0_7 = arith.constant 0 : index
    %28 = vector.load %arg2[%c0_6, %c0_7] : memref<8x128xf32, #tpu.memory_space<vmem>>, vector<8x128xf32>
    tpu.vector_store %arg2[%c0_6, %c0_7], %27 {strides = array<i32>} : memref<8x128xf32, #tpu.memory_space<vmem>>, vector<8x128xf32>,
    return
  }
  func.func @transform_0(%arg0: i32) -> (i32, i32) {
    %c0_i32 = arith.constant 0 : i32
    %c0_i32_0 = arith.constant 0 : i32
    return %arg0, %c0_i32 : i32, i32
  }
  func.func @transform_1(%arg0: i32) -> (i32, i32) {
    %c0_i32 = arith.constant 0 : i32
    %c0_i32_0 = arith.constant 0 : i32
    return %arg0, %c0_i32 : i32, i32
  }
}

</mosaic_0001>

<llo_original>
// kernel: tpu_custom_call.1
$region0: #{tpu_custom_call.1}
  #allocation0 [shape = 'u32[]', space=smem, size = 0x4, offset = 0x4, fixed_abs, tag = 'smem constant byte address 0x4 - core index']
  #allocation1 [shape = 'u32[144,128]{1,0:T(1,128)}', space=vmem, size = 0x12000, scoped, tag = 'internal scratch']
  %s0 = inlined_call_operand.hbm [shape: f32[8,256], index: 0, kind: input, shape index: {}]
  %s1 = inlined_call_operand.hbm [shape: f32[8,128], index: 1, kind: output, shape index: {}]
  %s2 = sld [smem:[#allocation0]]
  $region18: #{tpu_custom_call.1} parent=0
    _
  %s4 = ssub.s32 1, %s2
  %s5 = scalar_select 0, %s4, %s2
  $region1: #{tpu_custom_call.1} parent=0
    #allocation2 [shape = 'u8[8192]{0}', space=vmem, size = 0x2000, scoped, tag = 'input window, operand 0, single buffered']
    #allocation3 [shape = 's32[1]{0}', space=sflag, size = 0x4, scoped, tag = 'scoped memory for tpu_custom_call.1']
    #allocation4 [shape = 's32[1]{0}', space=sflag, size = 0x4, scoped, tag = 'scoped memory for tpu_custom_call.1']
    #allocation5 [shape = 'u8[4096]{0}', space=vmem, size = 0x1000, scoped, tag = 'output window, operand 0, single buffered']
    %6 = vsyncpa [#allocation3], 0
    %7 = vsyncpa [#allocation4], 0
    // Predicated region
    $region2: #{tpu_custom_call.1} parent=1 // pred_check
      _
    $region3: #{tpu_custom_call.1} parent=1 // pred_check_branch
      %9 = sbr.rel (0) target = $region5
    $region4: #{tpu_custom_call.1} parent=1 // pred_region
      %s11 = ssub.s32 256, 256
      %12 = vsyncadd [#allocation3], %s11
      %s14 = sshll.u32 [#allocation2], 4
      %s15 = int_to_ptr.vmem [resolvable:$true] %s14
      %17 = dma.hbm_to_vmem [thread:$0]  %s0, 256, %s15, [#allocation3]
    $region5: #{tpu_custom_call.1} parent=1 // pred_fallthru
      _
    // Predicated region
    $region6: #{tpu_custom_call.1} parent=1 // pred_check
      _
    $region7: #{tpu_custom_call.1} parent=1 // pred_check_branch
      %19 = sbr.rel (0) target = $region9
    $region8: #{tpu_custom_call.1} parent=1 // pred_region
      %20 = dma.done [#allocation3], 256
    $region9: #{tpu_custom_call.1} parent=1 // pred_fallthru
      _
    %v21 = vld [vmem:[#allocation2] sm:$0xff]
    %v22 = vld [vmem:[#allocation2 + $0x8] sm:$0xff]
    %v23 = vlaneseq
    %v24 = vshrl.u32 %v23, 7
    %v25 = vadd.s32 %v24, 8
    %v26 = vadd.s32 %v24, 16
    %v27 = vadd.s32 %v24, 24
    %v28 = vadd.s32 %v24, 32
    %v29 = vadd.s32 %v24, 40
    %v30 = vadd.s32 %v24, 48
    %v31 = vadd.s32 %v24, 56
    %v32 = vadd.s32 %v24, 64
    %v33 = vadd.s32 %v24, 72
    %v34 = vadd.s32 %v24, 80
    %v35 = vadd.s32 %v24, 88
    %v36 = vadd.s32 %v24, 96
    %v37 = vadd.s32 %v24, 104
    %v38 = vadd.s32 %v24, 112
    %v39 = vadd.s32 %v24, 120
    %v40 = vadd.s32 %v24, 128
    %v41 = vadd.s32 %v24, 136
    %v42 = vadd.s32 %v24, 144
    %v43 = vadd.s32 %v24, 152
    %v44 = vadd.s32 %v24, 160
    %v45 = vadd.s32 %v24, 168
    %v46 = vadd.s32 %v24, 176
    %v47 = vadd.s32 %v24, 184
    %v48 = vadd.s32 %v24, 192
    %v49 = vadd.s32 %v24, 200
    %v50 = vadd.s32 %v24, 208
    %v51 = vadd.s32 %v24, 216
    %v52 = vadd.s32 %v24, 224
    %v53 = vadd.s32 %v24, 232
    %v54 = vadd.s32 %v24, 240
    %v55 = vadd.s32 %v24, 248
    %v56 = vlaneseq
    %v57 = vand.u32 %v56, 127
    %v58 = vmul.u32 %v57, 2
    %vm59 = vcmp.eq.s32.totalorder %v24, %v58
    %vm60 = vcmp.eq.s32.totalorder %v25, %v58
    %vm61 = vcmp.eq.s32.totalorder %v26, %v58
    %vm62 = vcmp.eq.s32.totalorder %v27, %v58
    %vm63 = vcmp.eq.s32.totalorder %v28, %v58
    %vm64 = vcmp.eq.s32.totalorder %v29, %v58
    %vm65 = vcmp.eq.s32.totalorder %v30, %v58
    %vm66 = vcmp.eq.s32.totalorder %v31, %v58
    %vm67 = vcmp.eq.s32.totalorder %v32, %v58
    %vm68 = vcmp.eq.s32.totalorder %v33, %v58
    %vm69 = vcmp.eq.s32.totalorder %v34, %v58
    %vm70 = vcmp.eq.s32.totalorder %v35, %v58
    %vm71 = vcmp.eq.s32.totalorder %v36, %v58
    %vm72 = vcmp.eq.s32.totalorder %v37, %v58
    %vm73 = vcmp.eq.s32.totalorder %v38, %v58
    %vm74 = vcmp.eq.s32.totalorder %v39, %v58
    %vm75 = vcmp.eq.s32.totalorder %v40, %v58
    %vm76 = vcmp.eq.s32.totalorder %v41, %v58
    %vm77 = vcmp.eq.s32.totalorder %v42, %v58
    %vm78 = vcmp.eq.s32.totalorder %v43, %v58
    %vm79 = vcmp.eq.s32.totalorder %v44, %v58
    %vm80 = vcmp.eq.s32.totalorder %v45, %v58
    %vm81 = vcmp.eq.s32.totalorder %v46, %v58
    %vm82 = vcmp.eq.s32.totalorder %v47, %v58
    %vm83 = vcmp.eq.s32.totalorder %v48, %v58
    %vm84 = vcmp.eq.s32.totalorder %v49, %v58
    %vm85 = vcmp.eq.s32.totalorder %v50, %v58
    %vm86 = vcmp.eq.s32.totalorder %v51, %v58
    %vm87 = vcmp.eq.s32.totalorder %v52, %v58
    %vm88 = vcmp.eq.s32.totalorder %v53, %v58
    %vm89 = vcmp.eq.s32.totalorder %v54, %v58
    %vm90 = vcmp.eq.s32.totalorder %v55, %v58
    %v91 = vsel %vm59, 1, 0
    %v92 = vsel %vm60, 1, 0
    %v93 = vsel %vm61, 1, 0
    %v94 = vsel %vm62, 1, 0
    %v95 = vsel %vm63, 1, 0
    %v96 = vsel %vm64, 1, 0
    %v97 = vsel %vm65, 1, 0
    %v98 = vsel %vm66, 1, 0
    %v99 = vsel %vm67, 1, 0
    %v100 = vsel %vm68, 1, 0
    %v101 = vsel %vm69, 1, 0
    %v102 = vsel %vm70, 1, 0
    %v103 = vsel %vm71, 1, 0
    %v104 = vsel %vm72, 1, 0
    %v105 = vsel %vm73, 1, 0
    %v106 = vsel %vm74, 1, 0
    %v107 = vsel %vm75, 1, 0
    %v108 = vsel %vm76, 1, 0
    %v109 = vsel %vm77, 1, 0
    %v110 = vsel %vm78, 1, 0
    %v111 = vsel %vm79, 1, 0
    %v112 = vsel %vm80, 1, 0
    %v113 = vsel %vm81, 1, 0
    %v114 = vsel %vm82, 1, 0
    %v115 = vsel %vm83, 1, 0
    %v116 = vsel %vm84, 1, 0
    %v117 = vsel %vm85, 1, 0
    %v118 = vsel %vm86, 1, 0
    %v119 = vsel %vm87, 1, 0
    %v120 = vsel %vm88, 1, 0
    %v121 = vsel %vm89, 1, 0
    %v122 = vsel %vm90, 1, 0
    %v123 = vcvt.s32.f32 %v91
    %v124 = vcvt.s32.f32 %v92
    %v125 = vcvt.s32.f32 %v93
    %v126 = vcvt.s32.f32 %v94
    %v127 = vcvt.s32.f32 %v95
    %v128 = vcvt.s32.f32 %v96
    %v129 = vcvt.s32.f32 %v97
    %v130 = vcvt.s32.f32 %v98
    %v131 = vcvt.s32.f32 %v99
    %v132 = vcvt.s32.f32 %v100
    %v133 = vcvt.s32.f32 %v101
    %v134 = vcvt.s32.f32 %v102
    %v135 = vcvt.s32.f32 %v103
    %v136 = vcvt.s32.f32 %v104
    %v137 = vcvt.s32.f32 %v105
    %v138 = vcvt.s32.f32 %v106
    %v139 = vcvt.s32.f32 %v107
    %v140 = vcvt.s32.f32 %v108
    %v141 = vcvt.s32.f32 %v109
    %v142 = vcvt.s32.f32 %v110
    %v143 = vcvt.s32.f32 %v111
    %v144 = vcvt.s32.f32 %v112
    %v145 = vcvt.s32.f32 %v113
    %v146 = vcvt.s32.f32 %v114
    %v147 = vcvt.s32.f32 %v115
    %v148 = vcvt.s32.f32 %v116
    %v149 = vcvt.s32.f32 %v117
    %v150 = vcvt.s32.f32 %v118
    %v151 = vcvt.s32.f32 %v119
    %v152 = vcvt.s32.f32 %v120
    %v153 = vcvt.s32.f32 %v121
    %v154 = vcvt.s32.f32 %v122
    %v155 = vadd.s32 %v58, 1
    %vm156 = vcmp.eq.s32.totalorder %v24, %v155
    %vm157 = vcmp.eq.s32.totalorder %v25, %v155
    %vm158 = vcmp.eq.s32.totalorder %v26, %v155
    %vm159 = vcmp.eq.s32.totalorder %v27, %v155
    %vm160 = vcmp.eq.s32.totalorder %v28, %v155
    %vm161 = vcmp.eq.s32.totalorder %v29, %v155
    %vm162 = vcmp.eq.s32.totalorder %v30, %v155
    %vm163 = vcmp.eq.s32.totalorder %v31, %v155
    %vm164 = vcmp.eq.s32.totalorder %v32, %v155
    %vm165 = vcmp.eq.s32.totalorder %v33, %v155
    %vm166 = vcmp.eq.s32.totalorder %v34, %v155
    %vm167 = vcmp.eq.s32.totalorder %v35, %v155
    %vm168 = vcmp.eq.s32.totalorder %v36, %v155
    %vm169 = vcmp.eq.s32.totalorder %v37, %v155
    %vm170 = vcmp.eq.s32.totalorder %v38, %v155
    %vm171 = vcmp.eq.s32.totalorder %v39, %v155
    %vm172 = vcmp.eq.s32.totalorder %v40, %v155
    %vm173 = vcmp.eq.s32.totalorder %v41, %v155
    %vm174 = vcmp.eq.s32.totalorder %v42, %v155
    %vm175 = vcmp.eq.s32.totalorder %v43, %v155
    %vm176 = vcmp.eq.s32.totalorder %v44, %v155
    %vm177 = vcmp.eq.s32.totalorder %v45, %v155
    %vm178 = vcmp.eq.s32.totalorder %v46, %v155
    %vm179 = vcmp.eq.s32.totalorder %v47, %v155
    %vm180 = vcmp.eq.s32.totalorder %v48, %v155
    %vm181 = vcmp.eq.s32.totalorder %v49, %v155
    %vm182 = vcmp.eq.s32.totalorder %v50, %v155
    %vm183 = vcmp.eq.s32.totalorder %v51, %v155
    %vm184 = vcmp.eq.s32.totalorder %v52, %v155
    %vm185 = vcmp.eq.s32.totalorder %v53, %v155
    %vm186 = vcmp.eq.s32.totalorder %v54, %v155
    %vm187 = vcmp.eq.s32.totalorder %v55, %v155
    %v188 = vsel %vm156, 1, 0
    %v189 = vsel %vm157, 1, 0
    %v190 = vsel %vm158, 1, 0
    %v191 = vsel %vm159, 1, 0
    %v192 = vsel %vm160, 1, 0
    %v193 = vsel %vm161, 1, 0
    %v194 = vsel %vm162, 1, 0
    %v195 = vsel %vm163, 1, 0
    %v196 = vsel %vm164, 1, 0
    %v197 = vsel %vm165, 1, 0
    %v198 = vsel %vm166, 1, 0
    %v199 = vsel %vm167, 1, 0
    %v200 = vsel %vm168, 1, 0
    %v201 = vsel %vm169, 1, 0
    %v202 = vsel %vm170, 1, 0
    %v203 = vsel %vm171, 1, 0
    %v204 = vsel %vm172, 1, 0
    %v205 = vsel %vm173, 1, 0
    %v206 = vsel %vm174, 1, 0
    %v207 = vsel %vm175, 1, 0
    %v208 = vsel %vm176, 1, 0
    %v209 = vsel %vm177, 1, 0
    %v210 = vsel %vm178, 1, 0
    %v211 = vsel %vm179, 1, 0
    %v212 = vsel %vm180, 1, 0
    %v213 = vsel %vm181, 1, 0
    %v214 = vsel %vm182, 1, 0
    %v215 = vsel %vm183, 1, 0
    %v216 = vsel %vm184, 1, 0
    %v217 = vsel %vm185, 1, 0
    %v218 = vsel %vm186, 1, 0
    %v219 = vsel %vm187, 1, 0
    %v220 = vcvt.s32.f32 %v188
    %v221 = vcvt.s32.f32 %v189
    %v222 = vcvt.s32.f32 %v190
    %v223 = vcvt.s32.f32 %v191
    %v224 = vcvt.s32.f32 %v192
    %v225 = vcvt.s32.f32 %v193
    %v226 = vcvt.s32.f32 %v194
    %v227 = vcvt.s32.f32 %v195
    %v228 = vcvt.s32.f32 %v196
    %v229 = vcvt.s32.f32 %v197
    %v230 = vcvt.s32.f32 %v198
    %v231 = vcvt.s32.f32 %v199
    %v232 = vcvt.s32.f32 %v200
    %v233 = vcvt.s32.f32 %v201
    %v234 = vcvt.s32.f32 %v202
    %v235 = vcvt.s32.f32 %v203
    %v236 = vcvt.s32.f32 %v204
    %v237 = vcvt.s32.f32 %v205
    %v238 = vcvt.s32.f32 %v206
    %v239 = vcvt.s32.f32 %v207
    %v240 = vcvt.s32.f32 %v208
    %v241 = vcvt.s32.f32 %v209
    %v242 = vcvt.s32.f32 %v210
    %v243 = vcvt.s32.f32 %v211
    %v244 = vcvt.s32.f32 %v212
    %v245 = vcvt.s32.f32 %v213
    %v246 = vcvt.s32.f32 %v214
    %v247 = vcvt.s32.f32 %v215
    %v248 = vcvt.s32.f32 %v216
    %v249 = vcvt.s32.f32 %v217
    %v250 = vcvt.s32.f32 %v218
    %v251 = vcvt.s32.f32 %v219
    %252 = vmatprep.subr.mxu0 0.0
    %253 = vmatpush1.msra.mxu0 %v138
    %254 = vmatprep.subr.mxu0 0.0
    %255 = vmatpush1.msra.mxu0 %v137
    %256 = vmatprep.subr.mxu0 0.0
    %257 = vmatpush1.msra.mxu0 %v136
    %258 = vmatprep.subr.mxu0 0.0
    %259 = vmatpush1.msra.mxu0 %v135
    %260 = vmatprep.subr.mxu0 0.0
    %261 = vmatpush1.msra.mxu0 %v134
    %262 = vmatprep.subr.mxu0 0.0
    %263 = vmatpush1.msra.mxu0 %v133
    %264 = vmatprep.subr.mxu0 0.0
    %265 = vmatpush1.msra.mxu0 %v132
    %266 = vmatprep.subr.mxu0 0.0
    %267 = vmatpush1.msra.mxu0 %v131
    %268 = vmatprep.subr.mxu0 0.0
    %269 = vmatpush1.msra.mxu0 %v130
    %270 = vmatprep.subr.mxu0 0.0
    %271 = vmatpush1.msra.mxu0 %v129
    %272 = vmatprep.subr.mxu0 0.0
    %273 = vmatpush1.msra.mxu0 %v128
    %274 = vmatprep.subr.mxu0 0.0
    %275 = vmatpush1.msra.mxu0 %v127
    %276 = vmatprep.subr.mxu0 0.0
    %277 = vmatpush1.msra.mxu0 %v126
    %278 = vmatprep.subr.mxu0 0.0
    %279 = vmatpush1.msra.mxu0 %v125
    %280 = vmatprep.subr.mxu0 0.0
    %281 = vmatpush1.msra.mxu0 %v124
    %282 = vmatprep.subr.mxu0 0.0
    %283 = vmatpush1.msra.mxu0 %v123
    %284 = vmatprep.subr.mxu0 0.0
    %285 = vmatpush2.msra.mxu0 %v154
    %286 = vmatprep.subr.mxu0 0.0
    %287 = vmatpush2.msra.mxu0 %v153
    %288 = vmatprep.subr.mxu0 0.0
    %289 = vmatpush2.msra.mxu0 %v152
    %290 = vmatprep.subr.mxu0 0.0
    %291 = vmatpush2.msra.mxu0 %v151
    %292 = vmatprep.subr.mxu0 0.0
    %293 = vmatpush2.msra.mxu0 %v150
    %294 = vmatprep.subr.mxu0 0.0
    %295 = vmatpush2.msra.mxu0 %v149
    %296 = vmatprep.subr.mxu0 0.0
    %297 = vmatpush2.msra.mxu0 %v148
    %298 = vmatprep.subr.mxu0 0.0
    %299 = vmatpush2.msra.mxu0 %v147
    %300 = vmatprep.subr.mxu0 0.0
    %301 = vmatpush2.msra.mxu0 %v146
    %302 = vmatprep.subr.mxu0 0.0
    %303 = vmatpush2.msra.mxu0 %v145
    %304 = vmatprep.subr.mxu0 0.0
    %305 = vmatpush2.msra.mxu0 %v144
    %306 = vmatprep.subr.mxu0 0.0
    %307 = vmatpush2.msra.mxu0 %v143
    %308 = vmatprep.subr.mxu0 0.0
    %309 = vmatpush2.msra.mxu0 %v142
    %310 = vmatprep.subr.mxu0 0.0
    %311 = vmatpush2.msra.mxu0 %v141
    %312 = vmatprep.subr.mxu0 0.0
    %313 = vmatpush2.msra.mxu0 %v140
    %314 = vmatprep.subr.mxu0 0.0
    %315 = vmatpush2.msra.mxu0 %v139
    %316 = vmatprep.mubr.f32.mxu0 %v22
    %317 = vmatmul.mubr.f32.gmra.mxu0 %v21
    %v318 = vpop.f32.mrf.mxu0
    %v319 = vadd.f32 0.0, %v318
    %v320 = vpop.f32.mrf.mxu0
    %321 = vdwg.mxu0
    %322 = vmatprep.subr.mxu0 0.0
    %323 = vmatpush1.msra.mxu0 %v235
    %324 = vmatprep.subr.mxu0 0.0
    %325 = vmatpush1.msra.mxu0 %v234
    %326 = vmatprep.subr.mxu0 0.0
    %327 = vmatpush1.msra.mxu0 %v233
    %328 = vmatprep.subr.mxu0 0.0
    %329 = vmatpush1.msra.mxu0 %v232
    %330 = vmatprep.subr.mxu0 0.0
    %331 = vmatpush1.msra.mxu0 %v231
    %332 = vmatprep.subr.mxu0 0.0
    %333 = vmatpush1.msra.mxu0 %v230
    %334 = vmatprep.subr.mxu0 0.0
    %335 = vmatpush1.msra.mxu0 %v229
    %336 = vmatprep.subr.mxu0 0.0
    %337 = vmatpush1.msra.mxu0 %v228
    %338 = vmatprep.subr.mxu0 0.0
    %339 = vmatpush1.msra.mxu0 %v227
    %340 = vmatprep.subr.mxu0 0.0
    %341 = vmatpush1.msra.mxu0 %v226
    %342 = vmatprep.subr.mxu0 0.0
    %343 = vmatpush1.msra.mxu0 %v225
    %344 = vmatprep.subr.mxu0 0.0
    %345 = vmatpush1.msra.mxu0 %v224
    %346 = vmatprep.subr.mxu0 0.0
    %347 = vmatpush1.msra.mxu0 %v223
    %348 = vmatprep.subr.mxu0 0.0
    %349 = vmatpush1.msra.mxu0 %v222
    %350 = vmatprep.subr.mxu0 0.0
    %351 = vmatpush1.msra.mxu0 %v221
    %352 = vmatprep.subr.mxu0 0.0
    %353 = vmatpush1.msra.mxu0 %v220
    %354 = vmatprep.subr.mxu0 0.0
    %355 = vmatpush2.msra.mxu0 %v251
    %356 = vmatprep.subr.mxu0 0.0
    %357 = vmatpush2.msra.mxu0 %v250
    %358 = vmatprep.subr.mxu0 0.0
    %359 = vmatpush2.msra.mxu0 %v249
    %360 = vmatprep.subr.mxu0 0.0
    %361 = vmatpush2.msra.mxu0 %v248
    %362 = vmatprep.subr.mxu0 0.0
    %363 = vmatpush2.msra.mxu0 %v247
    %364 = vmatprep.subr.mxu0 0.0
    %365 = vmatpush2.msra.mxu0 %v246
    %366 = vmatprep.subr.mxu0 0.0
    %367 = vmatpush2.msra.mxu0 %v245
    %368 = vmatprep.subr.mxu0 0.0
    %369 = vmatpush2.msra.mxu0 %v244
    %370 = vmatprep.subr.mxu0 0.0
    %371 = vmatpush2.msra.mxu0 %v243
    %372 = vmatprep.subr.mxu0 0.0
    %373 = vmatpush2.msra.mxu0 %v242
    %374 = vmatprep.subr.mxu0 0.0
    %375 = vmatpush2.msra.mxu0 %v241
    %376 = vmatprep.subr.mxu0 0.0
    %377 = vmatpush2.msra.mxu0 %v240
    %378 = vmatprep.subr.mxu0 0.0
    %379 = vmatpush2.msra.mxu0 %v239
    %380 = vmatprep.subr.mxu0 0.0
    %381 = vmatpush2.msra.mxu0 %v238
    %382 = vmatprep.subr.mxu0 0.0
    %383 = vmatpush2.msra.mxu0 %v237
    %384 = vmatprep.subr.mxu0 0.0
    %385 = vmatpush2.msra.mxu0 %v236
    %386 = vmatprep.mubr.f32.mxu0 %v22
    %387 = vmatmul.mubr.f32.gmra.mxu0 %v21
    %v388 = vpop.f32.mrf.mxu0
    %v389 = vadd.f32 0.0, %v388
    %v390 = vpop.f32.mrf.mxu0
    %391 = vdwg.mxu0
    %v392 = vmul.f32 %v319, %v389
    %v393 = vmul.f32 %v392, 21.6816
    %v394 = vmul.f32 %v319, %v319
    %v395 = vmul.f32 %v394, 21.9377
    %v396 = vadd.f32 %v393, %v395
    %v397 = vmul.f32 %v389, %v389
    %v398 = vmul.f32 %v397, 33.6321
    %v399 = vadd.f32 %v396, %v398
    %400 = vst [vmem:[#allocation5] sm:$0xff] %v399
    // Predicated region
    $region10: #{tpu_custom_call.1} parent=1 // pred_check
      _
    $region11: #{tpu_custom_call.1} parent=1 // pred_check_branch
      %402 = sbr.rel (0) target = $region13
    $region12: #{tpu_custom_call.1} parent=1 // pred_region
      %s404 = ssub.s32 128, 128
      %405 = vsyncadd [#allocation4], %s404
      %s407 = sshll.u32 [#allocation5], 4
      %s408 = int_to_ptr.vmem [resolvable:$true] %s407
      %410 = dma.vmem_to_hbm [thread:$0]  %s408, 128, %s1, [#allocation4]
    $region13: #{tpu_custom_call.1} parent=1 // pred_fallthru
      _
    // Predicated region
    $region14: #{tpu_custom_call.1} parent=1 // pred_check
      _
    $region15: #{tpu_custom_call.1} parent=1 // pred_check_branch
      %412 = sbr.rel (0) target = $region17
    $region16: #{tpu_custom_call.1} parent=1 // pred_region
      %413 = dma.done [#allocation4], 128
    $region17: #{tpu_custom_call.1} parent=1 // pred_fallthru
      _
    %414 = vsyncpa [#allocation3], 1
    %415 = vsyncpa [#allocation4], 1

</llo_original>
